<compile_context>
chip_gen: v5e
topology: v5e:2x2
jax: 0.10.0
libtpu: 0.0.40
codegen_flags: <defaults>
</compile_context>

<pallas_src>
import functools

import numpy as np

import jax
import jax.numpy as jnp
from jax.experimental import pallas as pl
from jax.experimental.pallas import tpu as pltpu

LEAKY_ALPHA = 0.05     # nn.LeakyReLU(0.05)
SOFTPLUS_BETA = 1.0    # nn.Softplus(beta=1.0, threshold=20)
SOFTPLUS_TH = 20.0
EPS = 1e-6


def _round_up(x, m):
    return ((x + m - 1) // m) * m


def _cdiv(a, b):
    return -(-a // b)


def _vmem_budget_bytes():
    """Per-generation VMEM budget (leave ~25% headroom for compiler scratch)."""
    try:
        cap = int(pltpu.get_tpu_info().vmem_capacity_bytes)
    except Exception:
        cap = 64 << 20          # conservative: v7x has 64 MiB per TensorCore
    return max(16 << 20, min((cap * 3) // 4, 112 << 20))


def _choose_batch_tiling(batch, tb_cap):
    """Balance the batch tile so padding waste is < 8 rows per tile, and keep
    the parallel grid axis at >= 2 (even) steps for v7x megacore when the
    batch is large enough for that to be free."""
    tb_cap = max(8, (tb_cap // 8) * 8)
    n_tiles = _cdiv(batch, tb_cap)
    if batch >= 128:
        n_tiles = max(n_tiles, 2)
        if n_tiles % 2:
            n_tiles += 1
    tb = min(tb_cap, _round_up(_cdiv(batch, n_tiles), 8))
    b_pad = _round_up(batch, tb)
    return tb, b_pad


def _tril_kernel(n_hidden, *refs):
    """refs = x, (w_i, b_i) * n_hidden, w_eff, b_eff, diag, o."""
    x_ref = refs[0]
    idx = 1

    h = x_ref[...]
    # Hidden MLP stack: LeakyReLU(Linear(x)).  Weights may be bf16; accumulate
    # in f32 (preferred_element_type), bias add + activation in f32.
    for _ in range(n_hidden):
        w_ref, b_ref = refs[idx], refs[idx + 1]
        idx += 2
        h = (jnp.dot(h.astype(w_ref.dtype), w_ref[...],
                     preferred_element_type=jnp.float32) + b_ref[...])
        h = jnp.maximum(h, LEAKY_ALPHA * h)  # LeakyReLU (valid for 0<alpha<1)

    # Output Linear fused with the tril scatter (single MXU pass): columns of
    # w_eff/b_eff belonging to the strict upper triangle (and lane padding)
    # are exact zeros, so mat_flat is exactly 0 there.
    w_eff_ref, b_eff_ref = refs[idx], refs[idx + 1]
    idx += 2
    mat_flat = (jnp.dot(h.astype(w_eff_ref.dtype), w_eff_ref[...],
                        preferred_element_type=jnp.float32) + b_eff_ref[...])

    diag_ref, o_ref = refs[idx], refs[idx + 1]

    # Softplus(beta=1, threshold=20) + eps on diagonal entries only.
    # TODO(synk): for large matrix_dim, gather the diagonal columns into a
    # compact 128-lane slab before exp/log1p so the EUP slot does not bind.
    z = SOFTPLUS_BETA * mat_flat
    sp = jnp.log1p(jnp.exp(jnp.minimum(z, SOFTPLUS_TH))) / SOFTPLUS_BETA
    sp = jnp.where(z > SOFTPLUS_TH, mat_flat, sp)
    o_ref[...] = jnp.where(diag_ref[...] > 0.0, sp + EPS, mat_flat)


def tril_network_forward(x, params, matrix_dim, *, tile_b=1024,
                         compute_dtype=jnp.bfloat16):
    """x: (B, input_size) f32; params: list of (W, b), W (in, out), b (1, out).

    compute_dtype: dtype fed to the MXU (bf16 default); accumulation and the
    output stay f32.
    """
    batch, in_f = x.shape
    dd = matrix_dim * matrix_dim
    dd_pad = _round_up(dd, 128)          # lane-dense output width
    n_hidden = len(params) - 1           # last (W, b) pair is the output layer

    # --- Fold the one-hot tril scatter into the output layer (trace time) ---
    rows, cols = np.tril_indices(matrix_dim)   # same ordering as torch.tril_indices
    n_tril = rows.shape[0]
    scatter = np.zeros((n_tril, dd_pad), np.float32)
    scatter[np.arange(n_tril), rows * matrix_dim + cols] = 1.0
    scatter = jnp.asarray(scatter)

    diag = np.zeros((1, dd_pad), np.float32)
    d = np.arange(matrix_dim)
    diag[0, d * matrix_dim + d] = 1.0
    diag = jnp.asarray(diag)

    # --- Zero-pad hidden widths to multiples of 128 (exact) + dtype casts ----
    padded = []
    prev_w = in_f                        # first layer in-dim matches x (unpadded)
    for w, b in params[:-1]:
        n_in, n_out = w.shape
        out_p = _round_up(n_out, 128)
        w_p = jnp.pad(w, ((0, prev_w - n_in), (0, out_p - n_out)))
        b_p = jnp.pad(b, ((0, 0), (0, out_p - n_out)))
        padded.append((w_p.astype(compute_dtype), b_p))   # bias stays f32
        prev_w = out_p

    w_out, b_out = params[-1]
    w_out_p = jnp.pad(w_out, ((0, prev_w - w_out.shape[0]), (0, 0)))
    w_eff = jnp.dot(w_out_p, scatter).astype(compute_dtype)   # (prev_w, dd_pad)
    b_eff = jnp.dot(b_out, scatter)                            # (1, dd_pad) f32

    x_c = x.astype(compute_dtype)

    # --- VMEM-budgeted batch tiling -----------------------------------------
    vmem_budget = _vmem_budget_bytes()
    const_bytes = sum(int(w.size) * w.dtype.itemsize + int(b.size) * b.dtype.itemsize
                      for w, b in padded)
    const_bytes += int(w_eff.size) * w_eff.dtype.itemsize
    const_bytes += int(b_eff.size) * 4 + int(diag.size) * 4

    x_item = jnp.dtype(compute_dtype).itemsize
    max_width = max([dd_pad, in_f] + [int(w.shape[1]) for w, _ in padded])
    per_row = 2 * in_f * x_item + 2 * dd_pad * 4 + 3 * max_width * 4
    avail = max(per_row * 8, vmem_budget - 2 * const_bytes)
    tb_cap = max(8, (avail // per_row) // 8 * 8)

    tb, b_pad = _choose_batch_tiling(batch, min(tile_b, tb_cap))
    if b_pad != batch:
        x_c = jnp.pad(x_c, ((0, b_pad - batch), (0, 0)))

    kernel = functools.partial(_tril_kernel, n_hidden)

    def _run(buffered_consts):
        def _const_spec(shape):
            # Constants stay VMEM-resident across grid steps; single-buffer
            # them to halve their VMEM footprint when supported.
            if buffered_consts:
                return pl.BlockSpec(shape, lambda i: (0, 0),
                                    pipeline_mode=pl.Buffered(1))
            return pl.BlockSpec(shape, lambda i: (0, 0))

        args = [x_c]
        in_specs = [pl.BlockSpec((tb, in_f), lambda i: (i, 0))]
        for w, b in padded:
            args += [w, b]
            in_specs += [_const_spec(w.shape), _const_spec(b.shape)]
        args += [w_eff, b_eff, diag]
        in_specs += [_const_spec(w_eff.shape), _const_spec(b_eff.shape),
                     _const_spec(diag.shape)]

        return pl.pallas_call(
            kernel,
            out_shape=jax.ShapeDtypeStruct((b_pad, dd_pad), jnp.float32),
            grid=(b_pad // tb,),
            in_specs=in_specs,
            out_specs=pl.BlockSpec((tb, dd_pad), lambda i: (i, 0)),
            compiler_params=pltpu.CompilerParams(
                dimension_semantics=("parallel",),
                vmem_limit_bytes=int(vmem_budget)),
        )(*args)

    try:
        out_flat = _run(True)
        out_flat.block_until_ready()   # surface lowering/runtime issues here
    except Exception:                  # pragma: no cover - older Pallas fallback
        out_flat = _run(False)

    # Skip the extra HBM read+write when the output is already dense.
    if b_pad != batch or dd_pad != dd:
        out_flat = out_flat[:batch, :dd]
    return out_flat.reshape(batch, matrix_dim, matrix_dim)


def init_linear(key, n_in, n_out):
    """Deterministic PyTorch-style Linear init: U(-1/sqrt(n_in), 1/sqrt(n_in))."""
    kw, kb = jax.random.split(key)
    bound = 1.0 / float(np.sqrt(n_in))
    w = jax.random.uniform(kw, (n_in, n_out), jnp.float32, -bound, bound)
    b = jax.random.uniform(kb, (1, n_out), jnp.float32, -bound, bound)
    return w, b


def tril_reference(x, params, matrix_dim):
    """Pure-JAX reference mirroring TrilNetwork.forward (f32)."""
    h = x
    for w, b in params[:-1]:
        h = h @ w + b
        h = jnp.where(h >= 0.0, h, LEAKY_ALPHA * h)
    w_out, b_out = params[-1]
    y = h @ w_out + b_out
    rows, cols = np.tril_indices(matrix_dim)
    mat = jnp.zeros((x.shape[0], matrix_dim, matrix_dim), jnp.float32)
    mat = mat.at[:, rows, cols].set(y)
    z = SOFTPLUS_BETA * mat
    sp = jnp.where(z > SOFTPLUS_TH, mat,
                   jnp.log1p(jnp.exp(jnp.minimum(z, SOFTPLUS_TH))) / SOFTPLUS_BETA)
    mask = jnp.eye(matrix_dim, dtype=bool)
    return jnp.where(mask, sp + EPS, mat)


if __name__ == "__main__":
    # Small, module-consistent sizes.
    input_size = 16
    matrix_dim = 8
    hidden = [32, 32]          # hidden may be int or list; list exercised here
    batch = 8

    out_size = (matrix_dim ** 2 - matrix_dim) // 2 + matrix_dim  # 36
    sizes = [input_size] + list(hidden) + [out_size]

    key = jax.random.PRNGKey(0)
    keys = jax.random.split(key, len(sizes))  # one per layer + one for x

    params = [init_linear(keys[i], sizes[i], sizes[i + 1])
              for i in range(len(sizes) - 1)]
    x = jax.random.normal(keys[-1], (batch, input_size), jnp.float32)

    ref = np.asarray(jax.block_until_ready(tril_reference(x, params, matrix_dim)))

    def _check(out, rtol, atol):
        assert out.shape == (batch, matrix_dim, matrix_dim)
        o = np.asarray(out)
        assert np.all(np.triu(o, k=1) == 0.0)                     # strict upper = 0
        assert np.all(np.diagonal(o, axis1=1, axis2=2) > 0.0)     # diag > 0
        assert np.allclose(o, ref, rtol=rtol, atol=atol)

    # Exact f32 compute path — tight tolerance against the pure-JAX reference.
    out_f32 = jax.block_until_ready(
        tril_network_forward(x, params, matrix_dim, compute_dtype=jnp.float32))
    _check(out_f32, 1e-5, 1e-5)

    # Default bf16-MXU path (f32 accumulation/output) — loosened tolerance.
    out_bf16 = jax.block_until_ready(tril_network_forward(x, params, matrix_dim))
    _check(out_bf16, 5e-2, 5e-2)

    print("KERNEL_OK")
</pallas_src>

<mosaic_0001>
module attributes {stable_mosaic.version = 11 : i64} {
  func.func @_tril_kernel(%arg0: i32, %arg1: memref<8x16xf32, #tpu.memory_space<vmem>>, %arg2: memref<16x128xf32, #tpu.memory_space<vmem>>, %arg3: memref<1x128xf32, #tpu.memory_space<vmem>>, %arg4: memref<128x128xf32, #tpu.memory_space<vmem>>, %arg5: memref<1x128xf32, #tpu.memory_space<vmem>>, %arg6: memref<128x128xf32, #tpu.memory_space<vmem>>, %arg7: memref<1x128xf32, #tpu.memory_space<vmem>>, %arg8: memref<1x128xf32, #tpu.memory_space<vmem>>, %arg9: memref<8x128xf32, #tpu.memory_space<vmem>>) attributes {dimension_semantics = [#tpu.dimension_semantics<parallel>], iteration_bounds = array<i64: 1>, scalar_prefetch = 0 : i64, scratch_operands = 0 : i64, tpu.core_type = #tpu.core_type<tc>, window_params = [{transform_indices = @transform_0, window_bounds = array<i64: 8, 16>}, {pipeline_mode = #tpu.pipeline_mode<synchronous>, transform_indices = @transform_1, window_bounds = array<i64: 16, 128>}, {pipeline_mode = #tpu.pipeline_mode<synchronous>, transform_indices = @transform_2, window_bounds = array<i64: 1, 128>}, {pipeline_mode = #tpu.pipeline_mode<synchronous>, transform_indices = @transform_3, window_bounds = array<i64: 128, 128>}, {pipeline_mode = #tpu.pipeline_mode<synchronous>, transform_indices = @transform_4, window_bounds = array<i64: 1, 128>}, {pipeline_mode = #tpu.pipeline_mode<synchronous>, transform_indices = @transform_5, window_bounds = array<i64: 128, 128>}, {pipeline_mode = #tpu.pipeline_mode<synchronous>, transform_indices = @transform_6, window_bounds = array<i64: 1, 128>}, {pipeline_mode = #tpu.pipeline_mode<synchronous>, transform_indices = @transform_7, window_bounds = array<i64: 1, 128>}, {transform_indices = @transform_8, window_bounds = array<i64: 8, 128>}]} {
    %c0 = arith.constant 0 : index
    %c0_0 = arith.constant 0 : index
    %0 = vector.load %arg1[%c0, %c0_0] : memref<8x16xf32, #tpu.memory_space<vmem>>, vector<8x16xf32>
    %c0_1 = arith.constant 0 : index
    %c0_2 = arith.constant 0 : index
    %1 = vector.load %arg2[%c0_1, %c0_2] : memref<16x128xf32, #tpu.memory_space<vmem>>, vector<16x128xf32>
    %cst = arith.constant dense<0.000000e+00> : vector<8x128xf32>
    %2 = tpu.matmul %0, %1, %cst {dimension_numbers = #tpu.dot_dimension_numbers<[1], [0], [0], [1], [0, 0, 1, 1], [], []>} : vector<8x16xf32>, vector<16x128xf32>, vector<8x128xf32> -> vector<8x128xf32>
    %c0_3 = arith.constant 0 : index
    %c0_4 = arith.constant 0 : index
    %3 = vector.load %arg3[%c0_3, %c0_4] : memref<1x128xf32, #tpu.memory_space<vmem>>, vector<1x128xf32>
    %4 = vector.broadcast %3 : vector<1x128xf32> to vector<8x128xf32>
    %5 = arith.addf %2, %4 : vector<8x128xf32>
    %cst_5 = arith.constant 5.000000e-02 : f32
    %6 = vector.broadcast %cst_5 : f32 to vector<8x128xf32>
    %7 = arith.mulf %6, %5 : vector<8x128xf32>
    %8 = arith.maximumf %5, %7 : vector<8x128xf32>
    %c0_6 = arith.constant 0 : index
    %c0_7 = arith.constant 0 : index
    %9 = vector.load %arg4[%c0_6, %c0_7] : memref<128x128xf32, #tpu.memory_space<vmem>>, vector<128x128xf32>
    %cst_8 = arith.constant dense<0.000000e+00> : vector<8x128xf32>
    %10 = tpu.matmul %8, %9, %cst_8 {dimension_numbers = #tpu.dot_dimension_numbers<[1], [0], [0], [1], [0, 0, 1, 1], [], []>} : vector<8x128xf32>, vector<128x128xf32>, vector<8x128xf32> -> vector<8x128xf32>
    %c0_9 = arith.constant 0 : index
    %c0_10 = arith.constant 0 : index
    %11 = vector.load %arg5[%c0_9, %c0_10] : memref<1x128xf32, #tpu.memory_space<vmem>>, vector<1x128xf32>
    %12 = vector.broadcast %11 : vector<1x128xf32> to vector<8x128xf32>
    %13 = arith.addf %10, %12 : vector<8x128xf32>
    %cst_11 = arith.constant 5.000000e-02 : f32
    %14 = vector.broadcast %cst_11 : f32 to vector<8x128xf32>
    %15 = arith.mulf %14, %13 : vector<8x128xf32>
    %16 = arith.maximumf %13, %15 : vector<8x128xf32>
    %c0_12 = arith.constant 0 : index
    %c0_13 = arith.constant 0 : index
    %17 = vector.load %arg6[%c0_12, %c0_13] : memref<128x128xf32, #tpu.memory_space<vmem>>, vector<128x128xf32>
    %cst_14 = arith.constant dense<0.000000e+00> : vector<8x128xf32>
    %18 = tpu.matmul %16, %17, %cst_14 {dimension_numbers = #tpu.dot_dimension_numbers<[1], [0], [0], [1], [0, 0, 1, 1], [], []>} : vector<8x128xf32>, vector<128x128xf32>, vector<8x128xf32> -> vector<8x128xf32>
    %c0_15 = arith.constant 0 : index
    %c0_16 = arith.constant 0 : index
    %19 = vector.load %arg7[%c0_15, %c0_16] : memref<1x128xf32, #tpu.memory_space<vmem>>, vector<1x128xf32>
    %20 = vector.broadcast %19 : vector<1x128xf32> to vector<8x128xf32>
    %21 = arith.addf %18, %20 : vector<8x128xf32>
    %cst_17 = arith.constant 1.000000e+00 : f32
    %22 = vector.broadcast %cst_17 : f32 to vector<8x128xf32>
    %23 = arith.mulf %22, %21 : vector<8x128xf32>
    %cst_18 = arith.constant 2.000000e+01 : f32
    %24 = vector.broadcast %cst_18 : f32 to vector<8x128xf32>
    %25 = arith.minimumf %23, %24 : vector<8x128xf32>
    %26 = math.exp %25 : vector<8x128xf32>
    %27 = math.log1p %26 : vector<8x128xf32>
    %cst_19 = arith.constant 1.000000e+00 : f32
    %28 = vector.broadcast %cst_19 : f32 to vector<8x128xf32>
    %29 = arith.divf %27, %28 : vector<8x128xf32>
    %cst_20 = arith.constant 2.000000e+01 : f32
    %30 = vector.broadcast %cst_20 : f32 to vector<8x128xf32>
    %31 = arith.cmpf ogt, %23, %30 : vector<8x128xf32>
    %32 = arith.select %31, %21, %29 : vector<8x128xi1>, vector<8x128xf32>
    %c0_21 = arith.constant 0 : index
    %c0_22 = arith.constant 0 : index
    %33 = vector.load %arg8[%c0_21, %c0_22] : memref<1x128xf32, #tpu.memory_space<vmem>>, vector<1x128xf32>
    %cst_23 = arith.constant 0.000000e+00 : f32
    %34 = vector.broadcast %cst_23 : f32 to vector<1x128xf32>
    %35 = arith.cmpf ogt, %33, %34 : vector<1x128xf32>
    %cst_24 = arith.constant 9.99999997E-7 : f32
    %36 = vector.broadcast %cst_24 : f32 to vector<8x128xf32>
    %37 = arith.addf %32, %36 : vector<8x128xf32>
    %38 = vector.shape_cast %35 : vector<1x128xi1> to vector<1x128xi1>
    %39 = vector.broadcast %38 : vector<1x128xi1> to vector<8x128xi1>
    %40 = arith.select %39, %37, %21 : vector<8x128xi1>, vector<8x128xf32>
    %c0_25 = arith.constant 0 : index
    %c0_26 = arith.constant 0 : index
    %41 = vector.load %arg9[%c0_25, %c0_26] : memref<8x128xf32, #tpu.memory_space<vmem>>, vector<8x128xf32>
    tpu.vector_store %arg9[%c0_25, %c0_26], %40 {strides = array<i32>} : memref<8x128xf32, #tpu.memory_space<vmem>>, vector<8x128xf32>,
    return
  }
  func.func @transform_0(%arg0: i32) -> (i32, i32) {
    %c0_i32 = arith.constant 0 : i32
    %c0_i32_0 = arith.constant 0 : i32
    return %arg0, %c0_i32 : i32, i32
  }
  func.func @transform_1(%arg0: i32) -> (i32, i32) {
    %c0_i32 = arith.constant 0 : i32
    %c0_i32_0 = arith.constant 0 : i32
    %c0_i32_1 = arith.constant 0 : i32
    return %c0_i32, %c0_i32_0 : i32, i32
  }
  func.func @transform_2(%arg0: i32) -> (i32, i32) {
    %c0_i32 = arith.constant 0 : i32
    %c0_i32_0 = arith.constant 0 : i32
    %c0_i32_1 = arith.constant 0 : i32
    return %c0_i32, %c0_i32_0 : i32, i32
  }
  func.func @transform_3(%arg0: i32) -> (i32, i32) {
    %c0_i32 = arith.constant 0 : i32
    %c0_i32_0 = arith.constant 0 : i32
    %c0_i32_1 = arith.constant 0 : i32
    return %c0_i32, %c0_i32_0 : i32, i32
  }
  func.func @transform_4(%arg0: i32) -> (i32, i32) {
    %c0_i32 = arith.constant 0 : i32
    %c0_i32_0 = arith.constant 0 : i32
    %c0_i32_1 = arith.constant 0 : i32
    return %c0_i32, %c0_i32_0 : i32, i32
  }
  func.func @transform_5(%arg0: i32) -> (i32, i32) {
    %c0_i32 = arith.constant 0 : i32
    %c0_i32_0 = arith.constant 0 : i32
    %c0_i32_1 = arith.constant 0 : i32
    return %c0_i32, %c0_i32_0 : i32, i32
  }
  func.func @transform_6(%arg0: i32) -> (i32, i32) {
    %c0_i32 = arith.constant 0 : i32
    %c0_i32_0 = arith.constant 0 : i32
    %c0_i32_1 = arith.constant 0 : i32
    return %c0_i32, %c0_i32_0 : i32, i32
  }
  func.func @transform_7(%arg0: i32) -> (i32, i32) {
    %c0_i32 = arith.constant 0 : i32
    %c0_i32_0 = arith.constant 0 : i32
    %c0_i32_1 = arith.constant 0 : i32
    return %c0_i32, %c0_i32_0 : i32, i32
  }
  func.func @transform_8(%arg0: i32) -> (i32, i32) {
    %c0_i32 = arith.constant 0 : i32
    %c0_i32_0 = arith.constant 0 : i32
    return %arg0, %c0_i32 : i32, i32
  }
}

module attributes {stable_mosaic.version = 11 : i64} {
  func.func @_tril_kernel(%arg0: i32, %arg1: memref<8x16xf32, #tpu.memory_space<vmem>>, %arg2: memref<16x128xf32, #tpu.memory_space<vmem>>, %arg3: memref<1x128xf32, #tpu.memory_space<vmem>>, %arg4: memref<128x128xf32, #tpu.memory_space<vmem>>, %arg5: memref<1x128xf32, #tpu.memory_space<vmem>>, %arg6: memref<128x128xf32, #tpu.memory_space<vmem>>, %arg7: memref<1x128xf32, #tpu.memory_space<vmem>>, %arg8: memref<1x128xf32, #tpu.memory_space<vmem>>, %arg9: memref<8x128xf32, #tpu.memory_space<vmem>>) attributes {dimension_semantics = [#tpu.dimension_semantics<parallel>], iteration_bounds = array<i64: 1>, scalar_prefetch = 0 : i64, scratch_operands = 0 : i64, tpu.core_type = #tpu.core_type<tc>, window_params = [{transform_indices = @transform_0, window_bounds = array<i64: 8, 16>}, {pipeline_mode = #tpu.pipeline_mode<synchronous>, transform_indices = @transform_1, window_bounds = array<i64: 16, 128>}, {pipeline_mode = #tpu.pipeline_mode<synchronous>, transform_indices = @transform_2, window_bounds = array<i64: 1, 128>}, {pipeline_mode = #tpu.pipeline_mode<synchronous>, transform_indices = @transform_3, window_bounds = array<i64: 128, 128>}, {pipeline_mode = #tpu.pipeline_mode<synchronous>, transform_indices = @transform_4, window_bounds = array<i64: 1, 128>}, {pipeline_mode = #tpu.pipeline_mode<synchronous>, transform_indices = @transform_5, window_bounds = array<i64: 128, 128>}, {pipeline_mode = #tpu.pipeline_mode<synchronous>, transform_indices = @transform_6, window_bounds = array<i64: 1, 128>}, {pipeline_mode = #tpu.pipeline_mode<synchronous>, transform_indices = @transform_7, window_bounds = array<i64: 1, 128>}, {transform_indices = @transform_8, window_bounds = array<i64: 8, 128>}]} {
    %c0 = arith.constant 0 : index
    %c0_0 = arith.constant 0 : index
    %0 = vector.load %arg1[%c0, %c0_0] : memref<8x16xf32, #tpu.memory_space<vmem>>, vector<8x16xf32>
    %c0_1 = arith.constant 0 : index
    %c0_2 = arith.constant 0 : index
    %1 = vector.load %arg2[%c0_1, %c0_2] : memref<16x128xf32, #tpu.memory_space<vmem>>, vector<16x128xf32>
    %cst = arith.constant dense<0.000000e+00> : vector<8x128xf32>
    %2 = tpu.matmul %0, %1, %cst {dimension_numbers = #tpu.dot_dimension_numbers<[1], [0], [0], [1], [0, 0, 1, 1], [], []>} : vector<8x16xf32>, vector<16x128xf32>, vector<8x128xf32> -> vector<8x128xf32>
    %c0_3 = arith.constant 0 : index
    %c0_4 = arith.constant 0 : index
    %3 = vector.load %arg3[%c0_3, %c0_4] : memref<1x128xf32, #tpu.memory_space<vmem>>, vector<1x128xf32>
    %4 = vector.broadcast %3 : vector<1x128xf32> to vector<8x128xf32>
    %5 = arith.addf %2, %4 : vector<8x128xf32>
    %cst_5 = arith.constant 5.000000e-02 : f32
    %6 = vector.broadcast %cst_5 : f32 to vector<8x128xf32>
    %7 = arith.mulf %6, %5 : vector<8x128xf32>
    %8 = arith.maximumf %5, %7 : vector<8x128xf32>
    %c0_6 = arith.constant 0 : index
    %c0_7 = arith.constant 0 : index
    %9 = vector.load %arg4[%c0_6, %c0_7] : memref<128x128xf32, #tpu.memory_space<vmem>>, vector<128x128xf32>
    %cst_8 = arith.constant dense<0.000000e+00> : vector<8x128xf32>
    %10 = tpu.matmul %8, %9, %cst_8 {dimension_numbers = #tpu.dot_dimension_numbers<[1], [0], [0], [1], [0, 0, 1, 1], [], []>} : vector<8x128xf32>, vector<128x128xf32>, vector<8x128xf32> -> vector<8x128xf32>
    %c0_9 = arith.constant 0 : index
    %c0_10 = arith.constant 0 : index
    %11 = vector.load %arg5[%c0_9, %c0_10] : memref<1x128xf32, #tpu.memory_space<vmem>>, vector<1x128xf32>
    %12 = vector.broadcast %11 : vector<1x128xf32> to vector<8x128xf32>
    %13 = arith.addf %10, %12 : vector<8x128xf32>
    %cst_11 = arith.constant 5.000000e-02 : f32
    %14 = vector.broadcast %cst_11 : f32 to vector<8x128xf32>
    %15 = arith.mulf %14, %13 : vector<8x128xf32>
    %16 = arith.maximumf %13, %15 : vector<8x128xf32>
    %c0_12 = arith.constant 0 : index
    %c0_13 = arith.constant 0 : index
    %17 = vector.load %arg6[%c0_12, %c0_13] : memref<128x128xf32, #tpu.memory_space<vmem>>, vector<128x128xf32>
    %cst_14 = arith.constant dense<0.000000e+00> : vector<8x128xf32>
    %18 = tpu.matmul %16, %17, %cst_14 {dimension_numbers = #tpu.dot_dimension_numbers<[1], [0], [0], [1], [0, 0, 1, 1], [], []>} : vector<8x128xf32>, vector<128x128xf32>, vector<8x128xf32> -> vector<8x128xf32>
    %c0_15 = arith.constant 0 : index
    %c0_16 = arith.constant 0 : index
    %19 = vector.load %arg7[%c0_15, %c0_16] : memref<1x128xf32, #tpu.memory_space<vmem>>, vector<1x128xf32>
    %20 = vector.broadcast %19 : vector<1x128xf32> to vector<8x128xf32>
    %21 = arith.addf %18, %20 : vector<8x128xf32>
    %cst_17 = arith.constant 1.000000e+00 : f32
    %22 = vector.broadcast %cst_17 : f32 to vector<8x128xf32>
    %23 = arith.mulf %22, %21 : vector<8x128xf32>
    %cst_18 = arith.constant 2.000000e+01 : f32
    %24 = vector.broadcast %cst_18 : f32 to vector<8x128xf32>
    %25 = arith.minimumf %23, %24 : vector<8x128xf32>
    %26 = math.exp %25 : vector<8x128xf32>
    %27 = math.log1p %26 : vector<8x128xf32>
    %cst_19 = arith.constant 1.000000e+00 : f32
    %28 = vector.broadcast %cst_19 : f32 to vector<8x128xf32>
    %29 = arith.divf %27, %28 : vector<8x128xf32>
    %cst_20 = arith.constant 2.000000e+01 : f32
    %30 = vector.broadcast %cst_20 : f32 to vector<8x128xf32>
    %31 = arith.cmpf ogt, %23, %30 : vector<8x128xf32>
    %32 = arith.select %31, %21, %29 : vector<8x128xi1>, vector<8x128xf32>
    %c0_21 = arith.constant 0 : index
    %c0_22 = arith.constant 0 : index
    %33 = vector.load %arg8[%c0_21, %c0_22] : memref<1x128xf32, #tpu.memory_space<vmem>>, vector<1x128xf32>
    %cst_23 = arith.constant 0.000000e+00 : f32
    %34 = vector.broadcast %cst_23 : f32 to vector<1x128xf32>
    %35 = arith.cmpf ogt, %33, %34 : vector<1x128xf32>
    %cst_24 = arith.constant 9.99999997E-7 : f32
    %36 = vector.broadcast %cst_24 : f32 to vector<8x128xf32>
    %37 = arith.addf %32, %36 : vector<8x128xf32>
    %38 = vector.shape_cast %35 : vector<1x128xi1> to vector<1x128xi1>
    %39 = vector.broadcast %38 : vector<1x128xi1> to vector<8x128xi1>
    %40 = arith.select %39, %37, %21 : vector<8x128xi1>, vector<8x128xf32>
    %c0_25 = arith.constant 0 : index
    %c0_26 = arith.constant 0 : index
    %41 = vector.load %arg9[%c0_25, %c0_26] : memref<8x128xf32, #tpu.memory_space<vmem>>, vector<8x128xf32>
    tpu.vector_store %arg9[%c0_25, %c0_26], %40 {strides = array<i32>} : memref<8x128xf32, #tpu.memory_space<vmem>>, vector<8x128xf32>,
    return
  }
  func.func @transform_0(%arg0: i32) -> (i32, i32) {
    %c0_i32 = arith.constant 0 : i32
    %c0_i32_0 = arith.constant 0 : i32
    return %arg0, %c0_i32 : i32, i32
  }
  func.func @transform_1(%arg0: i32) -> (i32, i32) {
    %c0_i32 = arith.constant 0 : i32
    %c0_i32_0 = arith.constant 0 : i32
    %c0_i32_1 = arith.constant 0 : i32
    return %c0_i32, %c0_i32_0 : i32, i32
  }
  func.func @transform_2(%arg0: i32) -> (i32, i32) {
    %c0_i32 = arith.constant 0 : i32
    %c0_i32_0 = arith.constant 0 : i32
    %c0_i32_1 = arith.constant 0 : i32
    return %c0_i32, %c0_i32_0 : i32, i32
  }
  func.func @transform_3(%arg0: i32) -> (i32, i32) {
    %c0_i32 = arith.constant 0 : i32
    %c0_i32_0 = arith.constant 0 : i32
    %c0_i32_1 = arith.constant 0 : i32
    return %c0_i32, %c0_i32_0 : i32, i32
  }
  func.func @transform_4(%arg0: i32) -> (i32, i32) {
    %c0_i32 = arith.constant 0 : i32
    %c0_i32_0 = arith.constant 0 : i32
    %c0_i32_1 = arith.constant 0 : i32
    return %c0_i32, %c0_i32_0 : i32, i32
  }
  func.func @transform_5(%arg0: i32) -> (i32, i32) {
    %c0_i32 = arith.constant 0 : i32
    %c0_i32_0 = arith.constant 0 : i32
    %c0_i32_1 = arith.constant 0 : i32
    return %c0_i32, %c0_i32_0 : i32, i32
  }
  func.func @transform_6(%arg0: i32) -> (i32, i32) {
    %c0_i32 = arith.constant 0 : i32
    %c0_i32_0 = arith.constant 0 : i32
    %c0_i32_1 = arith.constant 0 : i32
    return %c0_i32, %c0_i32_0 : i32, i32
  }
  func.func @transform_7(%arg0: i32) -> (i32, i32) {
    %c0_i32 = arith.constant 0 : i32
    %c0_i32_0 = arith.constant 0 : i32
    %c0_i32_1 = arith.constant 0 : i32
    return %c0_i32, %c0_i32_0 : i32, i32
  }
  func.func @transform_8(%arg0: i32) -> (i32, i32) {
    %c0_i32 = arith.constant 0 : i32
    %c0_i32_0 = arith.constant 0 : i32
    return %arg0, %c0_i32 : i32, i32
  }
}

</mosaic_0001>

<llo_original>
// kernel: tpu_custom_call.1
$region0: #{tpu_custom_call.1}
  #allocation0 [shape = 'u32[]', space=smem, size = 0x4, offset = 0x4, fixed_abs, tag = 'smem constant byte address 0x4 - core index']
  #allocation1 [shape = 'u32[72,128]{1,0:T(1,128)}', space=vmem, size = 0x9000, scoped, tag = 'internal scratch']
  %s0 = inlined_call_operand.hbm [shape: f32[8,16], index: 0, kind: input, shape index: {}]
  %s1 = inlined_call_operand.hbm [shape: f32[16,128], index: 1, kind: input, shape index: {}]
  %s2 = inlined_call_operand.vmem [shape: f32[1,128], index: 2, kind: input, shape index: {}]
  %s3 = inlined_call_operand.hbm [shape: f32[128,128], index: 3, kind: input, shape index: {}]
  %s4 = inlined_call_operand.vmem [shape: f32[1,128], index: 4, kind: input, shape index: {}]
  %s5 = inlined_call_operand.hbm [shape: f32[128,128], index: 5, kind: input, shape index: {}]
  %s6 = inlined_call_operand.vmem [shape: f32[1,128], index: 6, kind: input, shape index: {}]
  %s7 = inlined_call_operand.vmem [shape: f32[1,128], index: 7, kind: input, shape index: {}]
  %s8 = inlined_call_operand.hbm [shape: f32[8,128], index: 8, kind: output, shape index: {}]
  %s9 = sld [smem:[#allocation0]]
  $region58: #{tpu_custom_call.1} parent=0
    _
  %s11 = ssub.s32 1, %s9
  %s12 = scalar_select 0, %s11, %s9
  $region1: #{tpu_custom_call.1} parent=0
    #allocation2 [shape = 'u8[4096]{0}', space=vmem, size = 0x1000, scoped, tag = 'input window, operand 0, single buffered']
    #allocation3 [shape = 's32[1]{0}', space=sflag, size = 0x4, scoped, tag = 'scoped memory for tpu_custom_call.1']
    #allocation4 [shape = 's32[1]{0}', space=sflag, size = 0x4, scoped, tag = 'scoped memory for tpu_custom_call.1']
    #allocation5 [shape = 'u8[8192]{0}', space=vmem, size = 0x2000, scoped, tag = 'input window, operand 1, single buffered']
    #allocation6 [shape = 's32[1]{0}', space=sflag, size = 0x4, scoped, tag = 'scoped memory for tpu_custom_call.1']
    #allocation7 [shape = 'u8[65536]{0}', space=vmem, size = 0x10000, scoped, tag = 'input window, operand 3, single buffered']
    #allocation8 [shape = 'u8[65536]{0}', space=vmem, size = 0x10000, scoped, tag = 'input window, operand 5, single buffered']
    #allocation9 [shape = 's32[1]{0}', space=sflag, size = 0x4, scoped, tag = 'scoped memory for tpu_custom_call.1']
    #allocation10 [shape = 'u8[4096]{0}', space=vmem, size = 0x1000, scoped, tag = 'output window, operand 0, single buffered']
    %13 = vsyncpa [#allocation3], 0
    %14 = vsyncpa [#allocation6], 0
    %15 = vsyncpa [#allocation9], 0
    %16 = vsyncpa [#allocation4], 0
    // Predicated region
    $region2: #{tpu_custom_call.1} parent=1 // pred_check
      _
    $region3: #{tpu_custom_call.1} parent=1 // pred_check_branch
      %18 = sbr.rel (0) target = $region5
    $region4: #{tpu_custom_call.1} parent=1 // pred_region
      %20 = vsyncadd [#allocation3], 0
      %s22 = sshll.u32 %s0, 4
      %s23 = int_to_ptr.hbm [resolvable:$true] %s22
      %s24 = sshll.u32 [#allocation2], 4
      %s25 = int_to_ptr.vmem [resolvable:$true] %s24
      %27 = dma.hbm_to_vmem [thread:$0]  %s23, 128, %s25, [#allocation3]
    $region5: #{tpu_custom_call.1} parent=1 // pred_fallthru
      _
    // Predicated region
    $region6: #{tpu_custom_call.1} parent=1 // pred_check
      _
    $region7: #{tpu_custom_call.1} parent=1 // pred_check_branch
      %29 = sbr.rel (0) target = $region9
    $region8: #{tpu_custom_call.1} parent=1 // pred_region
      %31 = vsyncadd [#allocation6], 0
      %s32 = sshll.u32 %s1, 4
      %s33 = int_to_ptr.hbm [resolvable:$true] %s32
      %s34 = sshll.u32 [#allocation5], 4
      %s35 = int_to_ptr.vmem [resolvable:$true] %s34
      %40 = dma.hbm_to_vmem [thread:$0]  %s33, 256, %s35, [#allocation6], 128, 128, 8
    $region9: #{tpu_custom_call.1} parent=1 // pred_fallthru
      _
    // Predicated region
    $region10: #{tpu_custom_call.1} parent=1 // pred_check
      _
    $region11: #{tpu_custom_call.1} parent=1 // pred_check_branch
      %42 = sbr.rel (0) target = $region13
    $region12: #{tpu_custom_call.1} parent=1 // pred_region
      _
    $region13: #{tpu_custom_call.1} parent=1 // pred_fallthru
      _
    // Predicated region
    $region14: #{tpu_custom_call.1} parent=1 // pred_check
      _
    $region15: #{tpu_custom_call.1} parent=1 // pred_check_branch
      %44 = sbr.rel (0) target = $region17
    $region16: #{tpu_custom_call.1} parent=1 // pred_region
      %46 = vsyncadd [#allocation6], 0
      %s47 = sshll.u32 %s3, 4
      %s48 = int_to_ptr.hbm [resolvable:$true] %s47
      %s49 = sshll.u32 [#allocation7], 4
      %s50 = int_to_ptr.vmem [resolvable:$true] %s49
      %55 = dma.hbm_to_vmem [thread:$0]  %s48, 2048, %s50, [#allocation6], 128, 128, 8
    $region17: #{tpu_custom_call.1} parent=1 // pred_fallthru
      _
    // Predicated region
    $region18: #{tpu_custom_call.1} parent=1 // pred_check
      _
    $region19: #{tpu_custom_call.1} parent=1 // pred_check_branch
      %57 = sbr.rel (0) target = $region21
    $region20: #{tpu_custom_call.1} parent=1 // pred_region
      _
    $region21: #{tpu_custom_call.1} parent=1 // pred_fallthru
      _
    // Predicated region
    $region22: #{tpu_custom_call.1} parent=1 // pred_check
      _
    $region23: #{tpu_custom_call.1} parent=1 // pred_check_branch
      %59 = sbr.rel (0) target = $region25
    $region24: #{tpu_custom_call.1} parent=1 // pred_region
      %61 = vsyncadd [#allocation9], 0
      %s62 = sshll.u32 %s5, 4
      %s63 = int_to_ptr.hbm [resolvable:$true] %s62
      %s64 = sshll.u32 [#allocation8], 4
      %s65 = int_to_ptr.vmem [resolvable:$true] %s64
      %70 = dma.hbm_to_vmem [thread:$0]  %s63, 2048, %s65, [#allocation9], 128, 128, 8
    $region25: #{tpu_custom_call.1} parent=1 // pred_fallthru
      _
    // Predicated region
    $region26: #{tpu_custom_call.1} parent=1 // pred_check
      _
    $region27: #{tpu_custom_call.1} parent=1 // pred_check_branch
      %72 = sbr.rel (0) target = $region29
    $region28: #{tpu_custom_call.1} parent=1 // pred_region
      _
    $region29: #{tpu_custom_call.1} parent=1 // pred_fallthru
      _
    // Predicated region
    $region30: #{tpu_custom_call.1} parent=1 // pred_check
      _
    $region31: #{tpu_custom_call.1} parent=1 // pred_check_branch
      %74 = sbr.rel (0) target = $region33
    $region32: #{tpu_custom_call.1} parent=1 // pred_region
      _
    $region33: #{tpu_custom_call.1} parent=1 // pred_fallthru
      _
    // Predicated region
    $region34: #{tpu_custom_call.1} parent=1 // pred_check
      _
    $region35: #{tpu_custom_call.1} parent=1 // pred_check_branch
      %76 = sbr.rel (0) target = $region37
    $region36: #{tpu_custom_call.1} parent=1 // pred_region
      %78 = dma.done [#allocation3], 128
    $region37: #{tpu_custom_call.1} parent=1 // pred_fallthru
      _
    // Predicated region
    $region38: #{tpu_custom_call.1} parent=1 // pred_check
      _
    $region39: #{tpu_custom_call.1} parent=1 // pred_check_branch
      %80 = sbr.rel (0) target = $region41
    $region40: #{tpu_custom_call.1} parent=1 // pred_region
      %82 = dma.done [#allocation6], 256
    $region41: #{tpu_custom_call.1} parent=1 // pred_fallthru
      _
    // Predicated region
    $region42: #{tpu_custom_call.1} parent=1 // pred_check
      _
    $region43: #{tpu_custom_call.1} parent=1 // pred_check_branch
      %84 = sbr.rel (0) target = $region45
    $region44: #{tpu_custom_call.1} parent=1 // pred_region
      %86 = dma.done [#allocation6], 2048
    $region45: #{tpu_custom_call.1} parent=1 // pred_fallthru
      _
    // Predicated region
    $region46: #{tpu_custom_call.1} parent=1 // pred_check
      _
    $region47: #{tpu_custom_call.1} parent=1 // pred_check_branch
      %88 = sbr.rel (0) target = $region49
    $region48: #{tpu_custom_call.1} parent=1 // pred_region
      %90 = dma.done [#allocation9], 2048
    $region49: #{tpu_custom_call.1} parent=1 // pred_fallthru
      _
    %v91 = vld [vmem:[#allocation2] sm:$0xff]
    %v92 = vld [vmem:[#allocation5] sm:$0xff]
    %v93 = vld [vmem:[#allocation5 + $0x8] sm:$0xff]
    %v94 = vld [vmem:[%s2] sm:$0x1]
    %v96 = vperm.slane %v94, 0
    %vm98 = vcmask 130048
    %v100 = vsel %vm98, %v91, 0
    %102 = vmatpush.msra.mxu0 0.0
    %103 = vmatpush.msra.mxu0 0.0
    %104 = vmatpush.msra.mxu0 0.0
    %105 = vmatpush.msra.mxu0 0.0
    %106 = vmatpush.msra.mxu0 0.0
    %107 = vmatpush.msra.mxu0 0.0
    %108 = vmatpush.msra.mxu0 0.0
    %109 = vmatpush.msra.mxu0 0.0
    %110 = vmatpush.msra.mxu0 0.0
    %111 = vmatpush.msra.mxu0 0.0
    %112 = vmatpush.msra.mxu0 0.0
    %113 = vmatpush.msra.mxu0 0.0
    %114 = vmatpush.msra.mxu0 0.0
    %115 = vmatpush.msra.mxu0 0.0
    %116 = vmatpush.msra.mxu0 %v93
    %117 = vmatpush.msra.mxu0 %v92
    %118 = vmatmul.f32.gmra.mxu0 %v100
    %v119 = vpop.f32.mrf.mxu0
    %v120 = vadd.f32 %v96, %v119
    %121 = vdwg.mxu0
    %v122 = vmul.f32 %v120, 0.05
    %v123 = vmax.f32 %v120, %v122
    %v124 = vld [vmem:[#allocation7] sm:$0xff]
    %v125 = vld [vmem:[#allocation7 + $0x8] sm:$0xff]
    %v126 = vld [vmem:[#allocation7 + $0x10] sm:$0xff]
    %v127 = vld [vmem:[#allocation7 + $0x18] sm:$0xff]
    %v128 = vld [vmem:[#allocation7 + $0x20] sm:$0xff]
    %v129 = vld [vmem:[#allocation7 + $0x28] sm:$0xff]
    %v130 = vld [vmem:[#allocation7 + $0x30] sm:$0xff]
    %v131 = vld [vmem:[#allocation7 + $0x38] sm:$0xff]
    %v132 = vld [vmem:[#allocation7 + $0x40] sm:$0xff]
    %v133 = vld [vmem:[#allocation7 + $0x48] sm:$0xff]
    %v134 = vld [vmem:[#allocation7 + $0x50] sm:$0xff]
    %v135 = vld [vmem:[#allocation7 + $0x58] sm:$0xff]
    %v136 = vld [vmem:[#allocation7 + $0x60] sm:$0xff]
    %v137 = vld [vmem:[#allocation7 + $0x68] sm:$0xff]
    %v138 = vld [vmem:[#allocation7 + $0x70] sm:$0xff]
    %v139 = vld [vmem:[#allocation7 + $0x78] sm:$0xff]
    %v140 = vld [vmem:[%s4] sm:$0x1]
    %v142 = vperm.slane %v140, 0
    %144 = vmatpush.msra.mxu0 %v139
    %145 = vmatpush.msra.mxu0 %v138
    %146 = vmatpush.msra.mxu0 %v137
    %147 = vmatpush.msra.mxu0 %v136
    %148 = vmatpush.msra.mxu0 %v135
    %149 = vmatpush.msra.mxu0 %v134
    %150 = vmatpush.msra.mxu0 %v133
    %151 = vmatpush.msra.mxu0 %v132
    %152 = vmatpush.msra.mxu0 %v131
    %153 = vmatpush.msra.mxu0 %v130
    %154 = vmatpush.msra.mxu0 %v129
    %155 = vmatpush.msra.mxu0 %v128
    %156 = vmatpush.msra.mxu0 %v127
    %157 = vmatpush.msra.mxu0 %v126
    %158 = vmatpush.msra.mxu0 %v125
    %159 = vmatpush.msra.mxu0 %v124
    %160 = vmatmul.f32.gmra.mxu0 %v123
    %v161 = vpop.f32.mrf.mxu0
    %v162 = vadd.f32 %v142, %v161
    %163 = vdwg.mxu0
    %v164 = vmul.f32 %v162, 0.05
    %v165 = vmax.f32 %v162, %v164
    %v166 = vld [vmem:[#allocation8] sm:$0xff]
    %v167 = vld [vmem:[#allocation8 + $0x8] sm:$0xff]
    %v168 = vld [vmem:[#allocation8 + $0x10] sm:$0xff]
    %v169 = vld [vmem:[#allocation8 + $0x18] sm:$0xff]
    %v170 = vld [vmem:[#allocation8 + $0x20] sm:$0xff]
    %v171 = vld [vmem:[#allocation8 + $0x28] sm:$0xff]
    %v172 = vld [vmem:[#allocation8 + $0x30] sm:$0xff]
    %v173 = vld [vmem:[#allocation8 + $0x38] sm:$0xff]
    %v174 = vld [vmem:[#allocation8 + $0x40] sm:$0xff]
    %v175 = vld [vmem:[#allocation8 + $0x48] sm:$0xff]
    %v176 = vld [vmem:[#allocation8 + $0x50] sm:$0xff]
    %v177 = vld [vmem:[#allocation8 + $0x58] sm:$0xff]
    %v178 = vld [vmem:[#allocation8 + $0x60] sm:$0xff]
    %v179 = vld [vmem:[#allocation8 + $0x68] sm:$0xff]
    %v180 = vld [vmem:[#allocation8 + $0x70] sm:$0xff]
    %v181 = vld [vmem:[#allocation8 + $0x78] sm:$0xff]
    %v182 = vld [vmem:[%s6] sm:$0x1]
    %v184 = vperm.slane %v182, 0
    %186 = vmatpush.msra.mxu0 %v181
    %187 = vmatpush.msra.mxu0 %v180
    %188 = vmatpush.msra.mxu0 %v179
    %189 = vmatpush.msra.mxu0 %v178
    %190 = vmatpush.msra.mxu0 %v177
    %191 = vmatpush.msra.mxu0 %v176
    %192 = vmatpush.msra.mxu0 %v175
    %193 = vmatpush.msra.mxu0 %v174
    %194 = vmatpush.msra.mxu0 %v173
    %195 = vmatpush.msra.mxu0 %v172
    %196 = vmatpush.msra.mxu0 %v171
    %197 = vmatpush.msra.mxu0 %v170
    %198 = vmatpush.msra.mxu0 %v169
    %199 = vmatpush.msra.mxu0 %v168
    %200 = vmatpush.msra.mxu0 %v167
    %201 = vmatpush.msra.mxu0 %v166
    %202 = vmatmul.f32.gmra.mxu0 %v165
    %v203 = vpop.f32.mrf.mxu0
    %v204 = vadd.f32 %v184, %v203
    %205 = vdwg.mxu0
    %v206 = vmin.f32 %v204, 20.0
    %v207 = vmul.f32 %v206, 1.442695
    %v208 = vpow.pop %v207
    %v209 = vadd.f32 %v208, 1.0
    %v210 = vlog2.pop %v209
    %v211 = vmul.f32 %v210, 0.6931472
    %v212 = vmul.f32 -0.5, %v208
    %v213 = vadd.f32 %v212, 1.0
    %v214 = vmul.f32 %v213, %v208
    %v215 = vand.u32 2147483647, %v208
    %vm216 = vcmp.lt.f32.partialorder %v215, 0.0004427343
    %v217 = vsel %vm216, %v214, %v211
    %vm218 = vcmp.gt.f32.partialorder %v204, 20.0
    %v219 = vsel %vm218, %v204, %v217
    %v220 = vld [vmem:[%s7] sm:$0x1]
    %vm221 = vcmp.gt.f32.partialorder %v220, 0.0
    %v222 = vadd.f32 %v219, 1e-06
    %v223 = vsel %vm221, 1, 0
    %v224 = vperm.slane %v223, 0
    %vm225 = vcmp.eq.s32.totalorder %v224, 1
    %v226 = vsel %vm225, %v222, %v204
    %227 = vst [vmem:[#allocation10] sm:$0xff] %v226
    // Predicated region
    $region50: #{tpu_custom_call.1} parent=1 // pred_check
      _
    $region51: #{tpu_custom_call.1} parent=1 // pred_check_branch
      %229 = sbr.rel (0) target = $region53
    $region52: #{tpu_custom_call.1} parent=1 // pred_region
      %231 = vsyncadd [#allocation4], 0
      %s233 = sshll.u32 [#allocation10], 4
      %s234 = int_to_ptr.vmem [resolvable:$true] %s233
      %s235 = sshll.u32 %s8, 4
      %s236 = int_to_ptr.hbm [resolvable:$true] %s235
      %238 = dma.vmem_to_hbm [thread:$0]  %s234, 128, %s236, [#allocation4]
    $region53: #{tpu_custom_call.1} parent=1 // pred_fallthru
      _
    // Predicated region
    $region54: #{tpu_custom_call.1} parent=1 // pred_check
      _
    $region55: #{tpu_custom_call.1} parent=1 // pred_check_branch
      %240 = sbr.rel (0) target = $region57
    $region56: #{tpu_custom_call.1} parent=1 // pred_region
      %242 = dma.done [#allocation4], 128
    $region57: #{tpu_custom_call.1} parent=1 // pred_fallthru
      _
    %243 = vsyncpa [#allocation3], 1
    %244 = vsyncpa [#allocation6], 1
    %245 = vsyncpa [#allocation9], 1
    %246 = vsyncpa [#allocation4], 1

// kernel: tpu_custom_call.1
$region0: #{tpu_custom_call.1}
  #allocation0 [shape = 'u32[]', space=smem, size = 0x4, offset = 0x4, fixed_abs, tag = 'smem constant byte address 0x4 - core index']
  #allocation1 [shape = 'u32[72,128]{1,0:T(1,128)}', space=vmem, size = 0x9000, scoped, tag = 'internal scratch']
  %s0 = inlined_call_operand.hbm [shape: f32[8,16], index: 0, kind: input, shape index: {}]
  %s1 = inlined_call_operand.hbm [shape: f32[16,128], index: 1, kind: input, shape index: {}]
  %s2 = inlined_call_operand.vmem [shape: f32[1,128], index: 2, kind: input, shape index: {}]
  %s3 = inlined_call_operand.hbm [shape: f32[128,128], index: 3, kind: input, shape index: {}]
  %s4 = inlined_call_operand.vmem [shape: f32[1,128], index: 4, kind: input, shape index: {}]
  %s5 = inlined_call_operand.hbm [shape: f32[128,128], index: 5, kind: input, shape index: {}]
  %s6 = inlined_call_operand.vmem [shape: f32[1,128], index: 6, kind: input, shape index: {}]
  %s7 = inlined_call_operand.vmem [shape: f32[1,128], index: 7, kind: input, shape index: {}]
  %s8 = inlined_call_operand.hbm [shape: f32[8,128], index: 8, kind: output, shape index: {}]
  %s9 = sld [smem:[#allocation0]]
  $region58: #{tpu_custom_call.1} parent=0
    _
  %s11 = ssub.s32 1, %s9
  %s12 = scalar_select 0, %s11, %s9
  $region1: #{tpu_custom_call.1} parent=0
    #allocation2 [shape = 'u8[4096]{0}', space=vmem, size = 0x1000, scoped, tag = 'input window, operand 0, single buffered']
    #allocation3 [shape = 's32[1]{0}', space=sflag, size = 0x4, scoped, tag = 'scoped memory for tpu_custom_call.1']
    #allocation4 [shape = 's32[1]{0}', space=sflag, size = 0x4, scoped, tag = 'scoped memory for tpu_custom_call.1']
    #allocation5 [shape = 'u8[8192]{0}', space=vmem, size = 0x2000, scoped, tag = 'input window, operand 1, single buffered']
    #allocation6 [shape = 's32[1]{0}', space=sflag, size = 0x4, scoped, tag = 'scoped memory for tpu_custom_call.1']
    #allocation7 [shape = 'u8[65536]{0}', space=vmem, size = 0x10000, scoped, tag = 'input window, operand 3, single buffered']
    #allocation8 [shape = 'u8[65536]{0}', space=vmem, size = 0x10000, scoped, tag = 'input window, operand 5, single buffered']
    #allocation9 [shape = 's32[1]{0}', space=sflag, size = 0x4, scoped, tag = 'scoped memory for tpu_custom_call.1']
    #allocation10 [shape = 'u8[4096]{0}', space=vmem, size = 0x1000, scoped, tag = 'output window, operand 0, single buffered']
    %13 = vsyncpa [#allocation3], 0
    %14 = vsyncpa [#allocation6], 0
    %15 = vsyncpa [#allocation9], 0
    %16 = vsyncpa [#allocation4], 0
    // Predicated region
    $region2: #{tpu_custom_call.1} parent=1 // pred_check
      _
    $region3: #{tpu_custom_call.1} parent=1 // pred_check_branch
      %18 = sbr.rel (0) target = $region5
    $region4: #{tpu_custom_call.1} parent=1 // pred_region
      %20 = vsyncadd [#allocation3], 0
      %s22 = sshll.u32 %s0, 4
      %s23 = int_to_ptr.hbm [resolvable:$true] %s22
      %s24 = sshll.u32 [#allocation2], 4
      %s25 = int_to_ptr.vmem [resolvable:$true] %s24
      %27 = dma.hbm_to_vmem [thread:$0]  %s23, 128, %s25, [#allocation3]
    $region5: #{tpu_custom_call.1} parent=1 // pred_fallthru
      _
    // Predicated region
    $region6: #{tpu_custom_call.1} parent=1 // pred_check
      _
    $region7: #{tpu_custom_call.1} parent=1 // pred_check_branch
      %29 = sbr.rel (0) target = $region9
    $region8: #{tpu_custom_call.1} parent=1 // pred_region
      %31 = vsyncadd [#allocation6], 0
      %s32 = sshll.u32 %s1, 4
      %s33 = int_to_ptr.hbm [resolvable:$true] %s32
      %s34 = sshll.u32 [#allocation5], 4
      %s35 = int_to_ptr.vmem [resolvable:$true] %s34
      %40 = dma.hbm_to_vmem [thread:$0]  %s33, 256, %s35, [#allocation6], 128, 128, 8
    $region9: #{tpu_custom_call.1} parent=1 // pred_fallthru
      _
    // Predicated region
    $region10: #{tpu_custom_call.1} parent=1 // pred_check
      _
    $region11: #{tpu_custom_call.1} parent=1 // pred_check_branch
      %42 = sbr.rel (0) target = $region13
    $region12: #{tpu_custom_call.1} parent=1 // pred_region
      _
    $region13: #{tpu_custom_call.1} parent=1 // pred_fallthru
      _
    // Predicated region
    $region14: #{tpu_custom_call.1} parent=1 // pred_check
      _
    $region15: #{tpu_custom_call.1} parent=1 // pred_check_branch
      %44 = sbr.rel (0) target = $region17
    $region16: #{tpu_custom_call.1} parent=1 // pred_region
      %46 = vsyncadd [#allocation6], 0
      %s47 = sshll.u32 %s3, 4
      %s48 = int_to_ptr.hbm [resolvable:$true] %s47
      %s49 = sshll.u32 [#allocation7], 4
      %s50 = int_to_ptr.vmem [resolvable:$true] %s49
      %55 = dma.hbm_to_vmem [thread:$0]  %s48, 2048, %s50, [#allocation6], 128, 128, 8
    $region17: #{tpu_custom_call.1} parent=1 // pred_fallthru
      _
    // Predicated region
    $region18: #{tpu_custom_call.1} parent=1 // pred_check
      _
    $region19: #{tpu_custom_call.1} parent=1 // pred_check_branch
      %57 = sbr.rel (0) target = $region21
    $region20: #{tpu_custom_call.1} parent=1 // pred_region
      _
    $region21: #{tpu_custom_call.1} parent=1 // pred_fallthru
      _
    // Predicated region
    $region22: #{tpu_custom_call.1} parent=1 // pred_check
      _
    $region23: #{tpu_custom_call.1} parent=1 // pred_check_branch
      %59 = sbr.rel (0) target = $region25
    $region24: #{tpu_custom_call.1} parent=1 // pred_region
      %61 = vsyncadd [#allocation9], 0
      %s62 = sshll.u32 %s5, 4
      %s63 = int_to_ptr.hbm [resolvable:$true] %s62
      %s64 = sshll.u32 [#allocation8], 4
      %s65 = int_to_ptr.vmem [resolvable:$true] %s64
      %70 = dma.hbm_to_vmem [thread:$0]  %s63, 2048, %s65, [#allocation9], 128, 128, 8
    $region25: #{tpu_custom_call.1} parent=1 // pred_fallthru
      _
    // Predicated region
    $region26: #{tpu_custom_call.1} parent=1 // pred_check
      _
    $region27: #{tpu_custom_call.1} parent=1 // pred_check_branch
      %72 = sbr.rel (0) target = $region29
    $region28: #{tpu_custom_call.1} parent=1 // pred_region
      _
    $region29: #{tpu_custom_call.1} parent=1 // pred_fallthru
      _
    // Predicated region
    $region30: #{tpu_custom_call.1} parent=1 // pred_check
      _
    $region31: #{tpu_custom_call.1} parent=1 // pred_check_branch
      %74 = sbr.rel (0) target = $region33
    $region32: #{tpu_custom_call.1} parent=1 // pred_region
      _
    $region33: #{tpu_custom_call.1} parent=1 // pred_fallthru
      _
    // Predicated region
    $region34: #{tpu_custom_call.1} parent=1 // pred_check
      _
    $region35: #{tpu_custom_call.1} parent=1 // pred_check_branch
      %76 = sbr.rel (0) target = $region37
    $region36: #{tpu_custom_call.1} parent=1 // pred_region
      %78 = dma.done [#allocation3], 128
    $region37: #{tpu_custom_call.1} parent=1 // pred_fallthru
      _
    // Predicated region
    $region38: #{tpu_custom_call.1} parent=1 // pred_check
      _
    $region39: #{tpu_custom_call.1} parent=1 // pred_check_branch
      %80 = sbr.rel (0) target = $region41
    $region40: #{tpu_custom_call.1} parent=1 // pred_region
      %82 = dma.done [#allocation6], 256
    $region41: #{tpu_custom_call.1} parent=1 // pred_fallthru
      _
    // Predicated region
    $region42: #{tpu_custom_call.1} parent=1 // pred_check
      _
    $region43: #{tpu_custom_call.1} parent=1 // pred_check_branch
      %84 = sbr.rel (0) target = $region45
    $region44: #{tpu_custom_call.1} parent=1 // pred_region
      %86 = dma.done [#allocation6], 2048
    $region45: #{tpu_custom_call.1} parent=1 // pred_fallthru
      _
    // Predicated region
    $region46: #{tpu_custom_call.1} parent=1 // pred_check
      _
    $region47: #{tpu_custom_call.1} parent=1 // pred_check_branch
      %88 = sbr.rel (0) target = $region49
    $region48: #{tpu_custom_call.1} parent=1 // pred_region
      %90 = dma.done [#allocation9], 2048
    $region49: #{tpu_custom_call.1} parent=1 // pred_fallthru
      _
    %v91 = vld [vmem:[#allocation2] sm:$0xff]
    %v92 = vld [vmem:[#allocation5] sm:$0xff]
    %v93 = vld [vmem:[#allocation5 + $0x8] sm:$0xff]
    %v94 = vld [vmem:[%s2] sm:$0x1]
    %v96 = vperm.slane %v94, 0
    %vm98 = vcmask 130048
    %v100 = vsel %vm98, %v91, 0
    %102 = vmatpush.msra.mxu0 0.0
    %103 = vmatpush.msra.mxu0 0.0
    %104 = vmatpush.msra.mxu0 0.0
    %105 = vmatpush.msra.mxu0 0.0
    %106 = vmatpush.msra.mxu0 0.0
    %107 = vmatpush.msra.mxu0 0.0
    %108 = vmatpush.msra.mxu0 0.0
    %109 = vmatpush.msra.mxu0 0.0
    %110 = vmatpush.msra.mxu0 0.0
    %111 = vmatpush.msra.mxu0 0.0
    %112 = vmatpush.msra.mxu0 0.0
    %113 = vmatpush.msra.mxu0 0.0
    %114 = vmatpush.msra.mxu0 0.0
    %115 = vmatpush.msra.mxu0 0.0
    %116 = vmatpush.msra.mxu0 %v93
    %117 = vmatpush.msra.mxu0 %v92
    %118 = vmatmul.f32.gmra.mxu0 %v100
    %v119 = vpop.f32.mrf.mxu0
    %v120 = vadd.f32 %v96, %v119
    %121 = vdwg.mxu0
    %v122 = vmul.f32 %v120, 0.05
    %v123 = vmax.f32 %v120, %v122
    %v124 = vld [vmem:[#allocation7] sm:$0xff]
    %v125 = vld [vmem:[#allocation7 + $0x8] sm:$0xff]
    %v126 = vld [vmem:[#allocation7 + $0x10] sm:$0xff]
    %v127 = vld [vmem:[#allocation7 + $0x18] sm:$0xff]
    %v128 = vld [vmem:[#allocation7 + $0x20] sm:$0xff]
    %v129 = vld [vmem:[#allocation7 + $0x28] sm:$0xff]
    %v130 = vld [vmem:[#allocation7 + $0x30] sm:$0xff]
    %v131 = vld [vmem:[#allocation7 + $0x38] sm:$0xff]
    %v132 = vld [vmem:[#allocation7 + $0x40] sm:$0xff]
    %v133 = vld [vmem:[#allocation7 + $0x48] sm:$0xff]
    %v134 = vld [vmem:[#allocation7 + $0x50] sm:$0xff]
    %v135 = vld [vmem:[#allocation7 + $0x58] sm:$0xff]
    %v136 = vld [vmem:[#allocation7 + $0x60] sm:$0xff]
    %v137 = vld [vmem:[#allocation7 + $0x68] sm:$0xff]
    %v138 = vld [vmem:[#allocation7 + $0x70] sm:$0xff]
    %v139 = vld [vmem:[#allocation7 + $0x78] sm:$0xff]
    %v140 = vld [vmem:[%s4] sm:$0x1]
    %v142 = vperm.slane %v140, 0
    %144 = vmatpush.msra.mxu0 %v139
    %145 = vmatpush.msra.mxu0 %v138
    %146 = vmatpush.msra.mxu0 %v137
    %147 = vmatpush.msra.mxu0 %v136
    %148 = vmatpush.msra.mxu0 %v135
    %149 = vmatpush.msra.mxu0 %v134
    %150 = vmatpush.msra.mxu0 %v133
    %151 = vmatpush.msra.mxu0 %v132
    %152 = vmatpush.msra.mxu0 %v131
    %153 = vmatpush.msra.mxu0 %v130
    %154 = vmatpush.msra.mxu0 %v129
    %155 = vmatpush.msra.mxu0 %v128
    %156 = vmatpush.msra.mxu0 %v127
    %157 = vmatpush.msra.mxu0 %v126
    %158 = vmatpush.msra.mxu0 %v125
    %159 = vmatpush.msra.mxu0 %v124
    %160 = vmatmul.f32.gmra.mxu0 %v123
    %v161 = vpop.f32.mrf.mxu0
    %v162 = vadd.f32 %v142, %v161
    %163 = vdwg.mxu0
    %v164 = vmul.f32 %v162, 0.05
    %v165 = vmax.f32 %v162, %v164
    %v166 = vld [vmem:[#allocation8] sm:$0xff]
    %v167 = vld [vmem:[#allocation8 + $0x8] sm:$0xff]
    %v168 = vld [vmem:[#allocation8 + $0x10] sm:$0xff]
    %v169 = vld [vmem:[#allocation8 + $0x18] sm:$0xff]
    %v170 = vld [vmem:[#allocation8 + $0x20] sm:$0xff]
    %v171 = vld [vmem:[#allocation8 + $0x28] sm:$0xff]
    %v172 = vld [vmem:[#allocation8 + $0x30] sm:$0xff]
    %v173 = vld [vmem:[#allocation8 + $0x38] sm:$0xff]
    %v174 = vld [vmem:[#allocation8 + $0x40] sm:$0xff]
    %v175 = vld [vmem:[#allocation8 + $0x48] sm:$0xff]
    %v176 = vld [vmem:[#allocation8 + $0x50] sm:$0xff]
    %v177 = vld [vmem:[#allocation8 + $0x58] sm:$0xff]
    %v178 = vld [vmem:[#allocation8 + $0x60] sm:$0xff]
    %v179 = vld [vmem:[#allocation8 + $0x68] sm:$0xff]
    %v180 = vld [vmem:[#allocation8 + $0x70] sm:$0xff]
    %v181 = vld [vmem:[#allocation8 + $0x78] sm:$0xff]
    %v182 = vld [vmem:[%s6] sm:$0x1]
    %v184 = vperm.slane %v182, 0
    %186 = vmatpush.msra.mxu0 %v181
    %187 = vmatpush.msra.mxu0 %v180
    %188 = vmatpush.msra.mxu0 %v179
    %189 = vmatpush.msra.mxu0 %v178
    %190 = vmatpush.msra.mxu0 %v177
    %191 = vmatpush.msra.mxu0 %v176
    %192 = vmatpush.msra.mxu0 %v175
    %193 = vmatpush.msra.mxu0 %v174
    %194 = vmatpush.msra.mxu0 %v173
    %195 = vmatpush.msra.mxu0 %v172
    %196 = vmatpush.msra.mxu0 %v171
    %197 = vmatpush.msra.mxu0 %v170
    %198 = vmatpush.msra.mxu0 %v169
    %199 = vmatpush.msra.mxu0 %v168
    %200 = vmatpush.msra.mxu0 %v167
    %201 = vmatpush.msra.mxu0 %v166
    %202 = vmatmul.f32.gmra.mxu0 %v165
    %v203 = vpop.f32.mrf.mxu0
    %v204 = vadd.f32 %v184, %v203
    %205 = vdwg.mxu0
    %v206 = vmin.f32 %v204, 20.0
    %v207 = vmul.f32 %v206, 1.442695
    %v208 = vpow.pop %v207
    %v209 = vadd.f32 %v208, 1.0
    %v210 = vlog2.pop %v209
    %v211 = vmul.f32 %v210, 0.6931472
    %v212 = vmul.f32 -0.5, %v208
    %v213 = vadd.f32 %v212, 1.0
    %v214 = vmul.f32 %v213, %v208
    %v215 = vand.u32 2147483647, %v208
    %vm216 = vcmp.lt.f32.partialorder %v215, 0.0004427343
    %v217 = vsel %vm216, %v214, %v211
    %vm218 = vcmp.gt.f32.partialorder %v204, 20.0
    %v219 = vsel %vm218, %v204, %v217
    %v220 = vld [vmem:[%s7] sm:$0x1]
    %vm221 = vcmp.gt.f32.partialorder %v220, 0.0
    %v222 = vadd.f32 %v219, 1e-06
    %v223 = vsel %vm221, 1, 0
    %v224 = vperm.slane %v223, 0
    %vm225 = vcmp.eq.s32.totalorder %v224, 1
    %v226 = vsel %vm225, %v222, %v204
    %227 = vst [vmem:[#allocation10] sm:$0xff] %v226
    // Predicated region
    $region50: #{tpu_custom_call.1} parent=1 // pred_check
      _
    $region51: #{tpu_custom_call.1} parent=1 // pred_check_branch
      %229 = sbr.rel (0) target = $region53
    $region52: #{tpu_custom_call.1} parent=1 // pred_region
      %231 = vsyncadd [#allocation4], 0
      %s233 = sshll.u32 [#allocation10], 4
      %s234 = int_to_ptr.vmem [resolvable:$true] %s233
      %s235 = sshll.u32 %s8, 4
      %s236 = int_to_ptr.hbm [resolvable:$true] %s235
      %238 = dma.vmem_to_hbm [thread:$0]  %s234, 128, %s236, [#allocation4]
    $region53: #{tpu_custom_call.1} parent=1 // pred_fallthru
      _
    // Predicated region
    $region54: #{tpu_custom_call.1} parent=1 // pred_check
      _
    $region55: #{tpu_custom_call.1} parent=1 // pred_check_branch
      %240 = sbr.rel (0) target = $region57
    $region56: #{tpu_custom_call.1} parent=1 // pred_region
      %242 = dma.done [#allocation4], 128
    $region57: #{tpu_custom_call.1} parent=1 // pred_fallthru
      _
    %243 = vsyncpa [#allocation3], 1
    %244 = vsyncpa [#allocation6], 1
    %245 = vsyncpa [#allocation9], 1
    %246 = vsyncpa [#allocation4], 1

</llo_original>
